<compile_context>
chip_gen: v6e
topology: v6e:2x2x1
jax: 0.10.0
libtpu: 0.0.40
codegen_flags: <defaults>
</compile_context>

<pallas_src>
import jax
import jax.numpy as jnp
from jax.experimental import pallas as pl
from jax.experimental.pallas import tpu as pltpu


def _youtube_noise_kernel(alpha_ref, wav_ref, noise_ref, out_ref):
    # Elementwise hot path on the VPU: scaled-noise add + clamp.
    alpha = alpha_ref[0]                                          # f32 scalar (SMEM)
    scaled = (alpha * noise_ref[...].astype(jnp.float32)).astype(wav_ref.dtype)
    mixed = wav_ref[...] + scaled                                 # broadcasts over batch dim
    out_ref[...] = jnp.clip(mixed, -1.0, 1.0).astype(out_ref.dtype)


def _round_up(x, m):
    return (x + m - 1) // m * m


def _vmem_budgets():
    """Generation-aware (tile VMEM budget, vmem_limit_bytes)."""
    try:
        info = pltpu.get_tpu_info()
        cap = int(getattr(info, "vmem_capacity_bytes", 64 << 20))
    except Exception:  # pragma: no cover - be conservative if the query fails
        cap = 64 << 20
    if cap >= (100 << 20):          # v5e / v6e: 128 MiB VMEM
        return 48 << 20, 96 << 20
    return 16 << 20, 32 << 20       # v7x (64 MiB) or unknown: stay conservative


def youtube_noise(wav, noise_wav, alpha=0.05, *, tile_b=None, tile_t=None,
                  donate_wav=False):
    """Apply YoutubeNoise augmentation with a Pallas TPU kernel.

    wav:        (B, T) float32 / bfloat16
    noise_wav:  (N,)   with N >= T
    alpha:      python float or scalar array (runtime value; no recompile per value)
    donate_wav: set True only when the caller donates `wav` (enables
                input_output_aliases so no separate output buffer is allocated).
    """
    B, T = wav.shape
    N = noise_wav.shape[0]
    if N < T:
        raise ValueError("noise buffer shorter than waveform")

    vmem_budget, vmem_limit = _vmem_budgets()
    itemsize = max(jnp.dtype(wav.dtype).itemsize, jnp.dtype(noise_wav.dtype).itemsize)
    alpha_arr = jnp.asarray(alpha, dtype=jnp.float32).reshape((1,))
    io_alias = {1: 0} if donate_wav else {}
    cparams = pltpu.CompilerParams(
        dimension_semantics=("parallel", "parallel"),
        vmem_limit_bytes=vmem_limit,
    )

    # --------------------------------------------------------------------- #
    # Small-batch path: fold time into the sublane dim so vregs are dense.
    # (B, T) -> (B, T//128, 128): a free, contiguous reshape.
    # --------------------------------------------------------------------- #
    if B < 8 and T % 128 == 0 and tile_b is None and tile_t is None:
        Tc = T // 128
        Nc = N // 128                       # Nc * 128 >= T since N >= T, T % 128 == 0
        per_row = 2 * 3 * 128 * itemsize    # double-buffered wav-in + out + noise rows
        max_rows = max(8, (vmem_budget // per_row) // 8 * 8)
        tile_rows = min(_round_up(Tc, 8), int(max_rows), 2048)
        # Guarantee >= 2 grid steps so both v7x TensorCores get work.
        while B * pl.cdiv(Tc, tile_rows) < 2 and tile_rows > 8:
            tile_rows = max(8, _round_up(pl.cdiv(tile_rows, 2), 8))

        wav3 = wav.reshape(B, Tc, 128)
        noise2 = noise_wav[: Nc * 128].reshape(Nc, 128)
        grid = (pl.cdiv(Tc, tile_rows), B)   # batch innermost: noise tile not re-DMA'd

        out3 = pl.pallas_call(
            _youtube_noise_kernel,
            out_shape=jax.ShapeDtypeStruct((B, Tc, 128), wav.dtype),
            grid_spec=pltpu.PrefetchScalarGridSpec(
                num_scalar_prefetch=0,
                grid=grid,
                in_specs=[
                    pl.BlockSpec(memory_space=pltpu.MemorySpace.SMEM),        # alpha (1,)
                    pl.BlockSpec((1, tile_rows, 128), lambda j, b: (b, j, 0)),  # wav
                    pl.BlockSpec((tile_rows, 128), lambda j, b: (j, 0)),        # noise
                ],
                out_specs=pl.BlockSpec((1, tile_rows, 128), lambda j, b: (b, j, 0)),
            ),
            compiler_params=cparams,
            input_output_aliases=io_alias,
        )(alpha_arr, wav3, noise2)
        return out3.reshape(B, T)

    # --------------------------------------------------------------------- #
    # General 2-D path: (tile_b, tile_t) batch x time tiles.
    # --------------------------------------------------------------------- #
    if tile_t is None:
        tile_t = min(_round_up(T, 128), 8192)          # lane-aligned, large
    if tile_b is None:
        per_row = 2 * 2 * tile_t * itemsize            # double-buffered wav-in + out
        max_rows = max(8, (vmem_budget // per_row) // 8 * 8)
        tile_b = B if B <= max_rows else int(max_rows)
        # NOTE: if B < 8 and T % 128 != 0 (so the folded path above is not
        # usable), a (B, tile_t) block fills only B of 8 sublanes per vreg;
        # accepted for the rare ragged-T tiny-batch case.

    # Guarantee >= 2 grid steps along a parallel axis so both v7x TCs get work.
    while pl.cdiv(B, tile_b) * pl.cdiv(T, tile_t) < 2:
        if tile_t > 128:
            tile_t = max(128, _round_up(pl.cdiv(tile_t, 2), 128))
        elif tile_b >= 16 and tile_b % 16 == 0:
            tile_b //= 2
        else:
            break  # input too small to split further; single step is fine

    grid = (pl.cdiv(T, tile_t), pl.cdiv(B, tile_b))    # batch innermost
    # Free metadata reshape: no slice / copy of the noise buffer in HBM.
    noise2d = noise_wav.reshape(1, N)

    return pl.pallas_call(
        _youtube_noise_kernel,
        out_shape=jax.ShapeDtypeStruct((B, T), wav.dtype),
        grid_spec=pltpu.PrefetchScalarGridSpec(
            num_scalar_prefetch=0,
            grid=grid,
            in_specs=[
                pl.BlockSpec(memory_space=pltpu.MemorySpace.SMEM),      # alpha (1,)
                pl.BlockSpec((tile_b, tile_t), lambda j, i: (i, j)),    # wav tile
                pl.BlockSpec((1, tile_t), lambda j, i: (0, j)),         # noise (bcast over B)
            ],
            out_specs=pl.BlockSpec((tile_b, tile_t), lambda j, i: (i, j)),
        ),
        compiler_params=cparams,
        input_output_aliases=io_alias,
    )(alpha_arr, wav, noise2d)


if __name__ == "__main__":
    key = jax.random.PRNGKey(0)
    k_wav, k_noise = jax.random.split(key)

    B, T = 2, 1024            # small waveform batch -> folded (sublane-dense) path
    NOISE_LEN = 4096          # fixed "youtube_noise" buffer, longer than any wav
    alpha = 0.05

    # Deterministic synthetic parameters / buffers (no .pt loading).
    wav = jax.random.uniform(k_wav, (B, T), dtype=jnp.float32, minval=-1.0, maxval=1.0)
    noise_buf = jax.random.uniform(
        k_noise, (NOISE_LEN,), dtype=jnp.float32, minval=-1.0, maxval=1.0
    )

    out = jax.block_until_ready(youtube_noise(wav, noise_buf, alpha))
    ref = jnp.clip(wav + alpha * noise_buf[:T][None, :], -1.0, 1.0)
    assert out.shape == (B, T) and out.dtype == jnp.float32
    assert jnp.allclose(out, ref, atol=1e-6), "mismatch vs reference"

    # Ragged T (not a multiple of 128) with N == T: exercises the 2-D fallback,
    # the >=2-grid-step rule, and a partial noise block ending exactly at the
    # array bound (reviewer's correctness concern).
    B2, T2 = 3, 1000
    wav2 = jax.random.uniform(
        jax.random.PRNGKey(1), (B2, T2), dtype=jnp.float32, minval=-1.0, maxval=1.0
    )
    noise_exact = noise_buf[:T2]
    out2 = jax.block_until_ready(youtube_noise(wav2, noise_exact, alpha))
    ref2 = jnp.clip(wav2 + alpha * noise_exact[None, :], -1.0, 1.0)
    assert out2.shape == (B2, T2)
    assert jnp.allclose(out2, ref2, atol=1e-6), "ragged-T / N==T mismatch vs reference"

    # Larger batch: exercises the dense sublane-aligned (tile_b, tile_t) path.
    B3, T3 = 16, 2048
    wav3 = jax.random.uniform(
        jax.random.PRNGKey(2), (B3, T3), dtype=jnp.float32, minval=-1.0, maxval=1.0
    )
    out3 = jax.block_until_ready(youtube_noise(wav3, noise_buf, alpha))
    ref3 = jnp.clip(wav3 + alpha * noise_buf[:T3][None, :], -1.0, 1.0)
    assert jnp.allclose(out3, ref3, atol=1e-6), "large-B mismatch vs reference"

    print("KERNEL_OK")
</pallas_src>

<mosaic_0001>
module attributes {stable_mosaic.version = 11 : i64} {
  func.func @_youtube_noise_kernel(%arg0: i32, %arg1: i32, %arg2: memref<1xf32, #tpu.memory_space<smem>>, %arg3: memref<1x8x128xf32, #tpu.memory_space<vmem>>, %arg4: memref<8x128xf32, #tpu.memory_space<vmem>>, %arg5: memref<1x8x128xf32, #tpu.memory_space<vmem>>) attributes {dimension_semantics = [#tpu.dimension_semantics<parallel>, #tpu.dimension_semantics<parallel>], iteration_bounds = array<i64: 1, 2>, scalar_prefetch = 0 : i64, scratch_operands = 0 : i64, tpu.core_type = #tpu.core_type<tc>, window_params = [{transform_indices = @transform_0, window_bounds = array<i64: 1>}, {transform_indices = @transform_1, window_bounds = array<i64: 1, 8, 128>}, {transform_indices = @transform_2, window_bounds = array<i64: 8, 128>}, {transform_indices = @transform_3, window_bounds = array<i64: 1, 8, 128>}]} {
    %c0 = arith.constant 0 : index
    %0 = memref.load %arg2[%c0] : memref<1xf32, #tpu.memory_space<smem>>
    %c0_0 = arith.constant 0 : index
    %c0_1 = arith.constant 0 : index
    %1 = vector.load %arg4[%c0_0, %c0_1] : memref<8x128xf32, #tpu.memory_space<vmem>>, vector<8x128xf32>
    %2 = vector.broadcast %0 : f32 to vector<8x128xf32>
    %3 = arith.mulf %2, %1 : vector<8x128xf32>
    %c0_2 = arith.constant 0 : index
    %c0_3 = arith.constant 0 : index
    %c0_4 = arith.constant 0 : index
    %4 = vector.load %arg3[%c0_2, %c0_3, %c0_4] : memref<1x8x128xf32, #tpu.memory_space<vmem>>, vector<1x8x128xf32>
    %5 = vector.shape_cast %3 : vector<8x128xf32> to vector<1x8x128xf32>
    %6 = arith.addf %4, %5 : vector<1x8x128xf32>
    %cst = arith.constant -1.000000e+00 : f32
    %cst_5 = arith.constant 1.000000e+00 : f32
    %7 = vector.broadcast %cst : f32 to vector<1x8x128xf32>
    %8 = arith.maximumf %7, %6 : vector<1x8x128xf32>
    %9 = vector.broadcast %cst_5 : f32 to vector<1x8x128xf32>
    %10 = arith.minimumf %9, %8 : vector<1x8x128xf32>
    %c0_6 = arith.constant 0 : index
    %c0_7 = arith.constant 0 : index
    %c0_8 = arith.constant 0 : index
    %11 = vector.load %arg5[%c0_6, %c0_7, %c0_8] : memref<1x8x128xf32, #tpu.memory_space<vmem>>, vector<1x8x128xf32>
    tpu.vector_store %arg5[%c0_6, %c0_7, %c0_8], %10 {strides = array<i32>} : memref<1x8x128xf32, #tpu.memory_space<vmem>>, vector<1x8x128xf32>,
    return
  }
  func.func @transform_0(%arg0: i32, %arg1: i32) -> i32 {
    %c0_i32 = arith.constant 0 : i32
    %c0_i32_0 = arith.constant 0 : i32
    return %c0_i32 : i32
  }
  func.func @transform_1(%arg0: i32, %arg1: i32) -> (i32, i32, i32) {
    %c0_i32 = arith.constant 0 : i32
    %c0_i32_0 = arith.constant 0 : i32
    return %arg1, %arg0, %c0_i32 : i32, i32, i32
  }
  func.func @transform_2(%arg0: i32, %arg1: i32) -> (i32, i32) {
    %c0_i32 = arith.constant 0 : i32
    %c0_i32_0 = arith.constant 0 : i32
    return %arg0, %c0_i32 : i32, i32
  }
  func.func @transform_3(%arg0: i32, %arg1: i32) -> (i32, i32, i32) {
    %c0_i32 = arith.constant 0 : i32
    %c0_i32_0 = arith.constant 0 : i32
    return %arg1, %arg0, %c0_i32 : i32, i32, i32
  }
}

</mosaic_0001>

<llo_original>
// kernel: tpu_custom_call.1
$region0: #{tpu_custom_call.1}
  #allocation0 [shape = 'u32[]', space=smem, size = 0x4, offset = 0x4, fixed_abs, tag = 'smem constant byte address 0x4 - core index']
  #allocation1 [shape = 'u32[144,128]{1,0:T(1,128)}', space=vmem, size = 0x12000, scoped, tag = 'internal scratch']
  #allocation2 [shape = 'f32[1]{0:T(128)S(6)}', space=smem, size = 0x200, scoped, tag = 'scoped memory for tpu_custom_call.1']
  %s0 = inlined_call_operand.<no memory space> [shape: f32[1], index: 0, kind: input, shape index: {}]
  %s1 = inlined_call_operand.hbm [shape: f32[2,8,128], index: 1, kind: input, shape index: {}]
  %s2 = inlined_call_operand.hbm [shape: f32[32,128], index: 2, kind: input, shape index: {}]
  %s3 = inlined_call_operand.hbm [shape: f32[2,8,128], index: 3, kind: output, shape index: {}]
  %s4 = sld [smem:[#allocation0]]
  $region53: #{tpu_custom_call.1} parent=0
    _
  %s6 = ssub.s32 1, %s4
  %s7 = scalar_select 0, %s6, %s4
  %8 = sst [smem:[#allocation2]] %s0
  $region1: #{tpu_custom_call.1} parent=0
    #allocation3 [shape = 'u8[8192]{0}', space=vmem, size = 0x2000, scoped, tag = 'input window, operand 1']
    #allocation4 [shape = 's32[2]{0}', space=sflag, size = 0x8, scoped, tag = 'scoped memory for tpu_custom_call.1']
    #allocation5 [shape = 's32[2]{0}', space=sflag, size = 0x8, scoped, tag = 'scoped memory for tpu_custom_call.1']
    #allocation6 [shape = 'u8[4096]{0}', space=vmem, size = 0x1000, scoped, tag = 'input window, operand 2, single buffered']
    #allocation7 [shape = 's32[1]{0}', space=sflag, size = 0x4, scoped, tag = 'scoped memory for tpu_custom_call.1']
    #allocation8 [shape = 'u8[8192]{0}', space=vmem, size = 0x2000, scoped, tag = 'output window, operand 0']
    %9 = vsyncpa [#allocation4], 0
    %s10 = scalar_lea.sflag [#allocation4], 1
    %11 = vsyncpa %s10, 0
    %12 = vsyncpa [#allocation7], 0
    %13 = vsyncpa [#allocation5], 0
    %s14 = scalar_lea.sflag [#allocation5], 1
    %15 = vsyncpa %s14, 0
    loop: start=0, step=1, limit=4
    $region2: #{tpu_custom_call.1} parent=1 // loop_pre_header
      _
    $region3: #{tpu_custom_call.1} parent=1 // loop_header
      %s17 = sphi 0, %s21
      %p18 = scmp.ge.s32.totalorder %s17, 4
      %s24 = sphi 0, %s36
      %s25 = sphi 0, %s32
      %s26 = sphi 0, %s24
      %s27 = sphi 0, %s25
      %s28 = sphi 0, %s26
      %s29 = sphi 0, %s27
      %s37 = sphi 0, %s37
      %s39 = sphi 0, %s37
      %s40 = sphi 0, %s39
      %s54 = sphi 0, %s40
      %s62 = sphi 0, %s64
      %s65 = sphi 0, %s62
      %s66 = sphi 0, %s65
      %s82 = sphi 0, %s66
      %s88 = sphi 0, %s90
      %s91 = sphi 0, %s88
      %s92 = sphi 0, %s91
      %s108 = sphi 0, %s92
      %s116 = sphi 0, %s118
      %s119 = sphi 0, %s116
      %s120 = sphi 0, %s119
      %s136 = sphi 0, %s120
    $region4: #{tpu_custom_call.1} parent=1 // loop_header_branch
      %20 = sbr.rel (%p18) target = $region8
    $region5: #{tpu_custom_call.1} parent=1 // loop_body
      %s22 = ssub.s32 %s17, 1
      %s23 = ssub.s32 %s17, 2
      %s30 = sadd.s32 1, %s25
      %p31 = scmp.ge.s32.totalorder %s30, 2
      %s32 = scalar_select %p31, 0, %s30
      %s33 = sadd.s32 1, %s24
      %s34 = scalar_select %p31, %s33, %s24
      %p35 = scmp.ge.s32.totalorder %s34, 1
      %s36 = scalar_select %p35, 0, %s34
      %s38 = sadd.s32 %s37, 1
      %p41 = scmp.eq.s32.totalorder %s17, 1
      %p42 = scmp.ne.s32.totalorder %s37, %s39
      %p43 = scmp.eq.s32.totalorder %s17, 0
      %p44 = por %p42, %p43
      %p45 = scmp.ne.s32.totalorder %s37, %s39
      %p46 = scmp.eq.s32.totalorder %s22, 1
      %p47 = por %p45, %p46
      %p48 = scmp.ne.s32.totalorder %s39, %s40
      %p49 = scmp.eq.s32.totalorder %s22, 0
      %p50 = por %p48, %p49
      %p51 = scmp.ne.s32.totalorder %s39, %s40
      %p52 = scmp.eq.s32.totalorder %s23, 1
      %p53 = por %p51, %p52
      %p55 = scmp.ne.s32.totalorder %s40, %s54
      %p56 = scmp.eq.s32.totalorder %s23, 0
      %p57 = por %p55, %p56
      %s58 = ssub.s32 %s25, %s32
      %s59 = ssub.s32 %s24, %s36
      %s60 = sor.u32 %s58, %s59
      %p61 = scmp.eq.s32.totalorder %s60, 0
      %s63 = sadd.s32 %s62, 1
      %s64 = scalar_select %p61, %s62, %s63
      %p67 = pneg %p61
      %p68 = scmp.eq.s32.totalorder %s17, 1
      %p69 = por %p67, %p68
      %p70 = scmp.ne.s32.totalorder %s62, %s65
      %p71 = scmp.eq.s32.totalorder %s17, 0
      %p72 = por %p70, %p71
      %p73 = scmp.ne.s32.totalorder %s62, %s65
      %p74 = scmp.eq.s32.totalorder %s22, 1
      %p75 = por %p73, %p74
      %p76 = scmp.ne.s32.totalorder %s65, %s66
      %p77 = scmp.eq.s32.totalorder %s22, 0
      %p78 = por %p76, %p77
      %p79 = scmp.ne.s32.totalorder %s65, %s66
      %p80 = scmp.eq.s32.totalorder %s23, 1
      %p81 = por %p79, %p80
      %p83 = scmp.ne.s32.totalorder %s66, %s82
      %p84 = scmp.eq.s32.totalorder %s23, 0
      %p85 = por %p83, %p84
      %s86 = ssub.s32 %s24, %s36
      %p87 = scmp.eq.s32.totalorder %s86, 0
      %s89 = sadd.s32 %s88, 1
      %s90 = scalar_select %p87, %s88, %s89
      %p93 = pneg %p87
      %p94 = scmp.eq.s32.totalorder %s17, 1
      %p95 = por %p93, %p94
      %p96 = scmp.ne.s32.totalorder %s88, %s91
      %p97 = scmp.eq.s32.totalorder %s17, 0
      %p98 = por %p96, %p97
      %p99 = scmp.ne.s32.totalorder %s88, %s91
      %p100 = scmp.eq.s32.totalorder %s22, 1
      %p101 = por %p99, %p100
      %p102 = scmp.ne.s32.totalorder %s91, %s92
      %p103 = scmp.eq.s32.totalorder %s22, 0
      %p104 = por %p102, %p103
      %p105 = scmp.ne.s32.totalorder %s91, %s92
      %p106 = scmp.eq.s32.totalorder %s23, 1
      %p107 = por %p105, %p106
      %p109 = scmp.ne.s32.totalorder %s92, %s108
      %p110 = scmp.eq.s32.totalorder %s23, 0
      %p111 = por %p109, %p110
      %s112 = ssub.s32 %s25, %s32
      %s113 = ssub.s32 %s24, %s36
      %s114 = sor.u32 %s112, %s113
      %p115 = scmp.eq.s32.totalorder %s114, 0
      %s117 = sadd.s32 %s116, 1
      %s118 = scalar_select %p115, %s116, %s117
      %p121 = pneg %p115
      %p122 = scmp.eq.s32.totalorder %s17, 1
      %p123 = por %p121, %p122
      %p124 = scmp.ne.s32.totalorder %s116, %s119
      %p125 = scmp.eq.s32.totalorder %s17, 0
      %p126 = por %p124, %p125
      %p127 = scmp.ne.s32.totalorder %s116, %s119
      %p128 = scmp.eq.s32.totalorder %s22, 1
      %p129 = por %p127, %p128
      %p130 = scmp.ne.s32.totalorder %s119, %s120
      %p131 = scmp.eq.s32.totalorder %s22, 0
      %p132 = por %p130, %p131
      %p133 = scmp.ne.s32.totalorder %s119, %s120
      %p134 = scmp.eq.s32.totalorder %s23, 1
      %p135 = por %p133, %p134
      %p137 = scmp.ne.s32.totalorder %s120, %s136
      %p138 = scmp.eq.s32.totalorder %s23, 0
      %p139 = por %p137, %p138
      %p140 = scmp.le.s32.totalorder 1, %s17
      %p141 = scmp.lt.s32.totalorder %s17, 3
      %p142 = pnand %p140, %p141
      %p143 = pneg %p142
      // Predicated region
      $region9: #{tpu_custom_call.1} parent=5 // pred_check
        _
      $region10: #{tpu_custom_call.1} parent=5 // pred_check_branch
        %145 = sbr.rel (%p142) target = $region12
      $region11: #{tpu_custom_call.1} parent=5 // pred_region
        %s146 = ssub.s32 %s17, 1
        // Predicated region
        $region13: #{tpu_custom_call.1} parent=11 // pred_check
          %p147 = pneg %p50
        $region14: #{tpu_custom_call.1} parent=11 // pred_check_branch
          %149 = sbr.rel (%p147) target = $region16
        $region15: #{tpu_custom_call.1} parent=11 // pred_region
          _
        $region16: #{tpu_custom_call.1} parent=11 // pred_fallthru
          _
        // Predicated region
        $region17: #{tpu_custom_call.1} parent=11 // pred_check
          %p150 = pneg %p104
        $region18: #{tpu_custom_call.1} parent=11 // pred_check_branch
          %152 = sbr.rel (%p150) target = $region20
        $region19: #{tpu_custom_call.1} parent=11 // pred_region
          %s154 = ssub.s32 128, 128
          %155 = vsyncadd [#allocation7], %s154
          %s156 = smul.addr %s26, 128
          %s157 = scalar_lea.hbm %s2, %s156
          %s159 = sshll.u32 [#allocation6], 4
          %s160 = int_to_ptr.vmem [resolvable:$true] %s159
          %162 = dma.hbm_to_vmem [thread:$0]  %s157, 128, %s160, [#allocation7]
        $region20: #{tpu_custom_call.1} parent=11 // pred_fallthru
          _
      $region12: #{tpu_custom_call.1} parent=5 // pred_fallthru
        _
      %p163 = scmp.lt.s32.totalorder %s17, 2
      // Predicated region
      $region21: #{tpu_custom_call.1} parent=5 // pred_check
        %p164 = pneg %p163
      $region22: #{tpu_custom_call.1} parent=5 // pred_check_branch
        %166 = sbr.rel (%p164) target = $region24
      $region23: #{tpu_custom_call.1} parent=5 // pred_region
        // Predicated region
        $region25: #{tpu_custom_call.1} parent=23 // pred_check
          %p167 = pneg %p72
        $region26: #{tpu_custom_call.1} parent=23 // pred_check_branch
          %169 = sbr.rel (%p167) target = $region28
        $region27: #{tpu_custom_call.1} parent=23 // pred_region
          %s170 = sand.u32 %s62, 1
          %s171 = scalar_lea.sflag [#allocation4], %s170
          %s172 = sand.u32 %s62, 1
          %s173 = smul.addr %s172, 8
          %s174 = scalar_lea.vmem [#allocation3], %s173
          %s176 = ssub.s32 128, 128
          %177 = vsyncadd %s171, %s176
          %s178 = sadd.s32 %s24, %s25
          %s179 = smul.addr %s178, 128
          %s180 = scalar_lea.hbm %s1, %s179
          %s182 = sshll.u32 %s174, 4
          %s183 = int_to_ptr.vmem [resolvable:$true] %s182
          %185 = dma.hbm_to_vmem [thread:$0]  %s180, 128, %s183, %s171
        $region28: #{tpu_custom_call.1} parent=23 // pred_fallthru
          _
      $region24: #{tpu_custom_call.1} parent=5 // pred_fallthru
        _
      %p186 = scmp.le.s32.totalorder 1, %s17
      %p187 = scmp.lt.s32.totalorder %s17, 3
      %p188 = pnand %p186, %p187
      %p189 = pneg %p188
      // Predicated region
      $region29: #{tpu_custom_call.1} parent=5 // pred_check
        _
      $region30: #{tpu_custom_call.1} parent=5 // pred_check_branch
        %191 = sbr.rel (%p188) target = $region32
      $region31: #{tpu_custom_call.1} parent=5 // pred_region
        %s192 = ssub.s32 %s17, 1
        %s193 = sand.u32 %s65, 1
        %s194 = scalar_lea.sflag [#allocation4], %s193
        %s195 = sand.u32 %s65, 1
        %s196 = smul.addr %s195, 8
        %s197 = scalar_lea.vmem [#allocation3], %s196
        // Predicated region
        $region33: #{tpu_custom_call.1} parent=31 // pred_check
          %p198 = pneg %p78
        $region34: #{tpu_custom_call.1} parent=31 // pred_check_branch
          %200 = sbr.rel (%p198) target = $region36
        $region35: #{tpu_custom_call.1} parent=31 // pred_region
          %201 = dma.done %s194, 128
        $region36: #{tpu_custom_call.1} parent=31 // pred_fallthru
          _
        // Predicated region
        $region37: #{tpu_custom_call.1} parent=31 // pred_check
          %p202 = pneg %p104
        $region38: #{tpu_custom_call.1} parent=31 // pred_check_branch
          %204 = sbr.rel (%p202) target = $region40
        $region39: #{tpu_custom_call.1} parent=31 // pred_region
          %205 = dma.done [#allocation7], 128
        $region40: #{tpu_custom_call.1} parent=31 // pred_fallthru
          _
        %p206 = pneg %p50
        %p207 = pneg %p47
        %s208 = sand.u32 %s65, 1
        %s209 = scalar_lea.sflag [#allocation4], %s208
        %s210 = sand.u32 %s65, 1
        %s211 = smul.addr %s210, 8
        %s212 = scalar_lea.vmem [#allocation3], %s211
        %p213 = pneg %p78
        %p214 = pneg %p75
        %p215 = pneg %p104
        %p216 = pneg %p101
        %p217 = pneg %p132
        %p218 = pneg %p129
        %s219 = sand.u32 %s119, 1
        %s220 = scalar_lea.sflag [#allocation5], %s219
        %s221 = sand.u32 %s119, 1
        %s222 = smul.addr %s221, 8
        %s223 = scalar_lea.vmem [#allocation8], %s222
        %s224 = sld [smem:[#allocation2]]
        %v225 = vld [vmem:[#allocation6] sm:$0xff]
        %v226 = vstv %s224
        %v227 = vmul.f32 %v226, %v225
        %v228 = vld [vmem:[%s197] sm:$0xff]
        %v229 = vadd.f32 %v228, %v227
        %v230 = vmax.f32 %v229, -1.0
        %v231 = vmin.f32 %v230, 1.0
        %232 = vst [vmem:[%s223] sm:$0xff] %v231
        %s233 = sand.u32 %s119, 1
        %s234 = scalar_lea.sflag [#allocation5], %s233
        %s235 = sand.u32 %s119, 1
        %s236 = smul.addr %s235, 8
        %s237 = scalar_lea.vmem [#allocation8], %s236
        // Predicated region
        $region41: #{tpu_custom_call.1} parent=31 // pred_check
          %p238 = pneg %p129
        $region42: #{tpu_custom_call.1} parent=31 // pred_check_branch
          %240 = sbr.rel (%p238) target = $region44
        $region43: #{tpu_custom_call.1} parent=31 // pred_region
          %s242 = ssub.s32 128, 128
          %243 = vsyncadd %s234, %s242
          %s244 = sadd.s32 %s26, %s27
          %s245 = smul.addr %s244, 128
          %s246 = scalar_lea.hbm %s3, %s245
          %s248 = sshll.u32 %s237, 4
          %s249 = int_to_ptr.vmem [resolvable:$true] %s248
          %251 = dma.vmem_to_hbm [thread:$0]  %s249, 128, %s246, %s234
        $region44: #{tpu_custom_call.1} parent=31 // pred_fallthru
          _
      $region32: #{tpu_custom_call.1} parent=5 // pred_fallthru
        _
      %p252 = scmp.le.s32.totalorder 2, %s17
      // Predicated region
      $region45: #{tpu_custom_call.1} parent=5 // pred_check
        %p253 = pneg %p252
      $region46: #{tpu_custom_call.1} parent=5 // pred_check_branch
        %255 = sbr.rel (%p253) target = $region48
      $region47: #{tpu_custom_call.1} parent=5 // pred_region
        %s256 = ssub.s32 %s17, 2
        // Predicated region
        $region49: #{tpu_custom_call.1} parent=47 // pred_check
          %p257 = pneg %p135
        $region50: #{tpu_custom_call.1} parent=47 // pred_check_branch
          %259 = sbr.rel (%p257) target = $region52
        $region51: #{tpu_custom_call.1} parent=47 // pred_region
          %s260 = sand.u32 %s120, 1
          %s261 = scalar_lea.sflag [#allocation5], %s260
          %s262 = sand.u32 %s120, 1
          %s263 = smul.addr %s262, 8
          %s264 = scalar_lea.vmem [#allocation8], %s263
          %265 = dma.done %s261, 128
        $region52: #{tpu_custom_call.1} parent=47 // pred_fallthru
          _
      $region48: #{tpu_custom_call.1} parent=5 // pred_fallthru
        _
    $region6: #{tpu_custom_call.1} parent=1 // loop_footer
      %s21 = sadd.s32 1, %s17
    $region7: #{tpu_custom_call.1} parent=1 // loop_footer_branch
      %16 = sbr.rel target = $region3
    $region8: #{tpu_custom_call.1} parent=1 // loop_exit
      _
    %266 = vsyncpa [#allocation4], 1
    %s267 = scalar_lea.sflag [#allocation4], 1
    %268 = vsyncpa %s267, 1
    %269 = vsyncpa [#allocation7], 1
    %270 = vsyncpa [#allocation5], 1
    %s271 = scalar_lea.sflag [#allocation5], 1
    %272 = vsyncpa %s271, 1

</llo_original>
